<compile_context>
chip_gen: v7x
topology: tpu7x:2x2x1
jax: 0.10.0
libtpu: 0.0.40
codegen_flags: <defaults>
</compile_context>

<pallas_src>
import jax
import jax.numpy as jnp
from jax.experimental import pallas as pl
from jax.experimental.pallas import tpu as pltpu


def _conv_bn_kernel(x_ref, w_ref, s_ref, b_ref, o_ref):
    """One (Cout-tile, batch, pixel-tile) grid step of conv-as-GEMM + fp32 BN epilogue.

    x_ref: (1, Kp, TP)   im2col'd input columns (K on sublanes, pixels on lanes)
    w_ref: (TC, Kp)      conv weights in the compute dtype (no BN fold)
    s_ref: (TC, 1)       fp32 BN scale  (gamma / sqrt(var + eps))
    b_ref: (TC, 1)       fp32 BN bias   (beta - mean * scale)
    o_ref: (1, TC, TP)   one slab of the (N, Cout, P_pad) output (flattened NCHW)
    """
    acc = jnp.dot(w_ref[...], x_ref[0], preferred_element_type=jnp.float32)
    o_ref[0] = (acc * s_ref[...] + b_ref[...]).astype(o_ref.dtype)


def _round_up(x, m):
    return -(-x // m) * m


def _vmem_limit_bytes():
    """Generation-aware VMEM limit: ~0.6x of 64 MiB on v7x (~38 MiB), ~0.75x of 128 MiB
    on v5e/v6e (~96 MiB). Falls back to a conservative 64 MiB capacity assumption."""
    cap = 64 * 1024 * 1024
    try:
        cap = int(pltpu.get_tpu_info().vmem_capacity_bytes)
    except Exception:
        pass
    frac = 0.6 if cap <= 64 * 1024 * 1024 else 0.75
    return max(32 * 1024 * 1024, int(cap * frac))


def _pick_cout_tile(cout, max_tc=256):
    """Cout tile: full Cout if small, else the largest multiple-of-8 divisor <= max_tc."""
    if cout <= max_tc:
        return cout
    cands = [t for t in range(8, max_tc + 1, 8) if cout % t == 0]
    return max(cands) if cands else cout


def _pick_pixel_tile(p_total, tc, kall_p, x_bytes, out_bytes, tile_budget):
    """Pixels per grid step: a multiple of 256 lanes (lane-dense, unmasked stores on all
    generations) in [256, 2048], sized so 2x the x tile + 2x the out tile + the resident
    weight tile fit the VMEM tile budget.  The result only streams through the MXU /
    store path, so it is NOT bounded by the vreg file.  If the whole pixel extent fits
    in one tile, use the smallest 256-multiple covering it (minimal padding)."""
    lane_mult = 256
    per_pixel = 2 * kall_p * x_bytes + 2 * tc * out_bytes      # dbl-buffered x + out
    fixed = 2 * tc * kall_p * x_bytes + 2 * 2 * tc * 4         # weights (x2) + scale/bias
    avail = tile_budget - fixed
    tp = (avail // per_pixel) // lane_mult * lane_mult if avail > 0 else 0
    tp = max(lane_mult, min(2048, tp))
    if p_total <= tp:
        tp = _round_up(p_total, lane_mult)
    return tp


def basic_conv2d(x_nchw, weight_oihw, gamma, beta, running_mean, running_var, *,
                 stride=1, padding=0, dilation=1, eps=1e-5,
                 compute_dtype=jnp.bfloat16, out_dtype=None):
    """BasicConv2d.forward(x) == bn(conv(x)); conv has bias=False, BN in eval mode.
    (The module defines a ReLU but does not apply it in forward, so neither do we.)"""
    n, cin, h, w = x_nchw.shape
    cout, _, kh, kw = weight_oihw.shape
    s, p, d = stride, padding, dilation
    ho = (h + 2 * p - d * (kh - 1) - 1) // s + 1
    wo = (w + 2 * p - d * (kw - 1) - 1) // s + 1
    kall = kh * kw * cin
    p_total = ho * wo
    if compute_dtype is None:
        compute_dtype = jnp.bfloat16
    if out_dtype is None:
        out_dtype = x_nchw.dtype

    x_bytes = jnp.dtype(compute_dtype).itemsize
    out_bytes = jnp.dtype(out_dtype).itemsize
    pack = max(8, 32 // x_bytes)               # sublane pack: 8 (f32) / 16 (bf16)
    kall_p = _round_up(kall, pack)

    # ---- generation-aware VMEM budget and tiling --------------------------------------
    vmem_limit = _vmem_limit_bytes()
    tile_budget = int(vmem_limit * 0.65)
    tc = _pick_cout_tile(cout)
    tp = _pick_pixel_tile(p_total, tc, kall_p, x_bytes, out_bytes, tile_budget)
    p_pad = _round_up(p_total, tp)
    grid = (cout // tc, n, p_pad // tp)        # weights resident across batch & pixels

    # ---- wrapper glue (XLA): pad, im2col straight from NCHW, BN terms ------------------
    # Cast before materializing the kh*kw-replicated slab so it is written in the
    # (bf16 by default) compute dtype.
    x_pad = jnp.pad(x_nchw, ((0, 0), (0, 0), (p, p), (p, p))).astype(compute_dtype)
    taps = []
    for dy in range(kh):
        for dx in range(kw):
            taps.append(x_pad[:, :, dy * d: dy * d + (ho - 1) * s + 1: s,
                              dx * d: dx * d + (wo - 1) * s + 1: s])   # (N,Cin,Ho,Wo)
    x_col = jnp.concatenate(taps, axis=1).reshape(n, kall, p_total)    # (N, K, P)
    x_col = jnp.pad(x_col, ((0, 0), (0, kall_p - kall), (0, p_pad - p_total)))

    # K ordering is (dy*kw + dx)*Cin + ci; the weight reshape below matches it.
    w_col = jnp.transpose(weight_oihw, (0, 2, 3, 1)).reshape(cout, kall)
    w_col = jnp.pad(w_col, ((0, 0), (0, kall_p - kall))).astype(compute_dtype)

    # BN (eval mode): per-channel fp32 scale/bias, applied in the kernel's fp32 epilogue.
    scale = (gamma.astype(jnp.float32)
             / jnp.sqrt(running_var.astype(jnp.float32) + eps)).reshape(cout, 1)
    bias = (beta.astype(jnp.float32).reshape(cout, 1)
            - running_mean.astype(jnp.float32).reshape(cout, 1) * scale)

    out_flat = pl.pallas_call(
        _conv_bn_kernel,
        out_shape=jax.ShapeDtypeStruct((n, cout, p_pad), out_dtype),
        grid_spec=pltpu.PrefetchScalarGridSpec(
            num_scalar_prefetch=0,
            grid=grid,
            in_specs=[
                # input pixel tile (changes with the innermost grid axis -> pipelined)
                pl.BlockSpec((1, kall_p, tp), lambda c, i, r: (i, 0, r)),
                # weights / BN scale / BN bias for one Cout tile (resident across i, r)
                pl.BlockSpec((tc, kall_p), lambda c, i, r: (c, 0)),
                pl.BlockSpec((tc, 1), lambda c, i, r: (c, 0)),
                pl.BlockSpec((tc, 1), lambda c, i, r: (c, 0)),
            ],
            out_specs=pl.BlockSpec((1, tc, tp), lambda c, i, r: (i, c, r)),
        ),
        compiler_params=pltpu.CompilerParams(
            # all grid points write disjoint output blocks
            dimension_semantics=("parallel", "parallel", "parallel"),
            vmem_limit_bytes=vmem_limit,
        ),
    )(x_col, w_col, scale, bias)

    # crop the pixel padding; flattened NCHW -> NCHW (no transpose needed)
    return out_flat[:, :, :p_total].reshape(n, cout, ho, wo)


if __name__ == "__main__":
    def reference(x, w, gamma, beta, mean, var, *, stride, padding, dilation, eps):
        y = jax.lax.conv_general_dilated(
            x, w, window_strides=(stride, stride),
            padding=((padding, padding), (padding, padding)),
            rhs_dilation=(dilation, dilation),
            dimension_numbers=("NCHW", "OIHW", "NCHW"))
        sc = gamma / jnp.sqrt(var + eps)
        b = beta - mean * sc
        return y * sc[None, :, None, None] + b[None, :, None, None]

    eps = 1e-5
    configs = [
        # (N, Cin, Cout, H, W, k, stride, padding, dilation, compute_dtype, atol)
        (2, 4, 8, 16, 16, 3, 1, 1, 1, jnp.float32, 1e-4),   # BasicConv2d(4, 8, 3, padding=1)
        (1, 4, 8, 17, 19, 3, 1, 1, 1, jnp.float32, 1e-4),   # Ho*Wo not a 128-multiple -> pad/crop
        (1, 4, 8, 32, 32, 3, 2, 1, 1, jnp.float32, 1e-4),   # strided conv
        (1, 4, 8, 64, 64, 3, 1, 2, 2, jnp.float32, 1e-4),   # dilated; multiple pixel tiles
        (2, 8, 16, 16, 16, 1, 1, 0, 1, jnp.float32, 1e-4),  # 1x1 conv
        (2, 4, 8, 16, 16, 3, 1, 1, 1, None, 7e-2),          # default bf16 MXU operands, fp32 acc
    ]

    key = jax.random.PRNGKey(0)
    for idx, (N, Ci, Co, H, W, k, st, pd, dl, cdt, atol) in enumerate(configs):
        key, kx, kw_, kg, kb, km, kv = jax.random.split(key, 7)
        x = jax.random.normal(kx, (N, Ci, H, W), dtype=jnp.float32)
        wt = jax.random.normal(kw_, (Co, Ci, k, k), dtype=jnp.float32) * 0.1
        gamma = jax.random.uniform(kg, (Co,), minval=0.5, maxval=1.5, dtype=jnp.float32)
        beta = jax.random.normal(kb, (Co,), dtype=jnp.float32) * 0.1
        mean = jax.random.normal(km, (Co,), dtype=jnp.float32) * 0.1
        var = jax.random.uniform(kv, (Co,), minval=0.5, maxval=1.5, dtype=jnp.float32)

        out = basic_conv2d(x, wt, gamma, beta, mean, var, stride=st, padding=pd,
                           dilation=dl, eps=eps, compute_dtype=cdt)
        out = jax.block_until_ready(out)

        ref = reference(x, wt, gamma, beta, mean, var, stride=st, padding=pd,
                        dilation=dl, eps=eps)
        assert out.shape == ref.shape, (idx, out.shape, ref.shape)
        err = float(jnp.max(jnp.abs(out.astype(jnp.float32) - ref)))
        assert err < atol, (idx, err)

    print("KERNEL_OK")
</pallas_src>

<mosaic_0001>
module attributes {stable_mosaic.version = 11 : i64} {
  func.func @_conv_bn_kernel(%arg0: i32, %arg1: i32, %arg2: i32, %arg3: memref<1x40x256xf32, #tpu.memory_space<vmem>>, %arg4: memref<8x40xf32, #tpu.memory_space<vmem>>, %arg5: memref<8x1xf32, #tpu.memory_space<vmem>>, %arg6: memref<8x1xf32, #tpu.memory_space<vmem>>, %arg7: memref<1x8x256xf32, #tpu.memory_space<vmem>>) attributes {dimension_semantics = [#tpu.dimension_semantics<parallel>, #tpu.dimension_semantics<parallel>, #tpu.dimension_semantics<parallel>], iteration_bounds = array<i64: 1, 2, 1>, scalar_prefetch = 0 : i64, scratch_operands = 0 : i64, tpu.core_type = #tpu.core_type<tc>, window_params = [{transform_indices = @transform_0, window_bounds = array<i64: 1, 40, 256>}, {transform_indices = @transform_1, window_bounds = array<i64: 8, 40>}, {transform_indices = @transform_2, window_bounds = array<i64: 8, 1>}, {transform_indices = @transform_3, window_bounds = array<i64: 8, 1>}, {transform_indices = @transform_4, window_bounds = array<i64: 1, 8, 256>}]} {
    %c0 = arith.constant 0 : index
    %c0_0 = arith.constant 0 : index
    %0 = vector.load %arg4[%c0, %c0_0] : memref<8x40xf32, #tpu.memory_space<vmem>>, vector<8x40xf32>
    %c0_1 = arith.constant 0 : index
    %c0_2 = arith.constant 0 : index
    %c0_3 = arith.constant 0 : index
    %1 = vector.load %arg3[%c0_1, %c0_2, %c0_3] : memref<1x40x256xf32, #tpu.memory_space<vmem>>, vector<1x40x256xf32>
    %2 = vector.shape_cast %1 : vector<1x40x256xf32> to vector<40x256xf32>
    %cst = arith.constant dense<0.000000e+00> : vector<8x256xf32>
    %3 = tpu.matmul %0, %2, %cst {dimension_numbers = #tpu.dot_dimension_numbers<[1], [0], [0], [1], [0, 0, 1, 1], [], []>} : vector<8x40xf32>, vector<40x256xf32>, vector<8x256xf32> -> vector<8x256xf32>
    %c0_4 = arith.constant 0 : index
    %c0_5 = arith.constant 0 : index
    %4 = vector.load %arg5[%c0_4, %c0_5] : memref<8x1xf32, #tpu.memory_space<vmem>>, vector<8x1xf32>
    %5 = vector.broadcast %4 : vector<8x1xf32> to vector<8x256xf32>
    %6 = arith.mulf %3, %5 : vector<8x256xf32>
    %c0_6 = arith.constant 0 : index
    %c0_7 = arith.constant 0 : index
    %7 = vector.load %arg6[%c0_6, %c0_7] : memref<8x1xf32, #tpu.memory_space<vmem>>, vector<8x1xf32>
    %8 = vector.broadcast %7 : vector<8x1xf32> to vector<8x256xf32>
    %9 = arith.addf %6, %8 : vector<8x256xf32>
    %c0_8 = arith.constant 0 : index
    %c0_9 = arith.constant 0 : index
    %c0_10 = arith.constant 0 : index
    %10 = vector.load %arg7[%c0_8, %c0_9, %c0_10] : memref<1x8x256xf32, #tpu.memory_space<vmem>>, vector<1x8x256xf32>
    %11 = vector.shape_cast %10 : vector<1x8x256xf32> to vector<8x256xf32>
    %12 = vector.shape_cast %9 : vector<8x256xf32> to vector<1x8x256xf32>
    tpu.vector_store %arg7[%c0_8, %c0_9, %c0_10], %12 {strides = array<i32>} : memref<1x8x256xf32, #tpu.memory_space<vmem>>, vector<1x8x256xf32>,
    return
  }
  func.func @transform_0(%arg0: i32, %arg1: i32, %arg2: i32) -> (i32, i32, i32) {
    %c0_i32 = arith.constant 0 : i32
    %c0_i32_0 = arith.constant 0 : i32
    return %arg1, %c0_i32, %arg2 : i32, i32, i32
  }
  func.func @transform_1(%arg0: i32, %arg1: i32, %arg2: i32) -> (i32, i32) {
    %c0_i32 = arith.constant 0 : i32
    %c0_i32_0 = arith.constant 0 : i32
    return %arg0, %c0_i32 : i32, i32
  }
  func.func @transform_2(%arg0: i32, %arg1: i32, %arg2: i32) -> (i32, i32) {
    %c0_i32 = arith.constant 0 : i32
    %c0_i32_0 = arith.constant 0 : i32
    return %arg0, %c0_i32 : i32, i32
  }
  func.func @transform_3(%arg0: i32, %arg1: i32, %arg2: i32) -> (i32, i32) {
    %c0_i32 = arith.constant 0 : i32
    %c0_i32_0 = arith.constant 0 : i32
    return %arg0, %c0_i32 : i32, i32
  }
  func.func @transform_4(%arg0: i32, %arg1: i32, %arg2: i32) -> (i32, i32, i32) {
    %c0_i32 = arith.constant 0 : i32
    return %arg1, %arg0, %arg2 : i32, i32, i32
  }
}

</mosaic_0001>

<llo_original>
// kernel: tpu_custom_call.1
$region0: #{tpu_custom_call.1}
  #allocation0 [shape = 'u32[]', space=smem, size = 0x4, offset = 0x4, fixed_abs, tag = 'smem constant byte address 0x4 - core index']
  #allocation1 [shape = 'u32[144,128]{1,0:T(1,128)}', space=vmem, size = 0x12000, scoped, tag = 'internal scratch']
  %s0 = inlined_call_operand.hbm [shape: f32[2,40,256], index: 0, kind: input, shape index: {}]
  %s1 = inlined_call_operand.vmem [shape: f32[8,40], index: 1, kind: input, shape index: {}]
  %s2 = inlined_call_operand.vmem [shape: f32[8,1], index: 2, kind: input, shape index: {}]
  %s3 = inlined_call_operand.vmem [shape: f32[8,1], index: 3, kind: input, shape index: {}]
  %s4 = inlined_call_operand.hbm [shape: f32[2,8,256], index: 4, kind: output, shape index: {}]
  %s5 = sld [smem:[#allocation0]]
  $region53: #{tpu_custom_call.1} parent=0
    _
  %s7 = ssub.s32 1, %s5
  %s8 = scalar_select 0, %s7, %s5
  $region1: #{tpu_custom_call.1} parent=0
    #allocation2 [shape = 'u8[81920]{0}', space=vmem, size = 0x14000, scoped, tag = 'input window, operand 0']
    #allocation3 [shape = 's32[2]{0}', space=sflag, size = 0x8, scoped, tag = 'scoped memory for tpu_custom_call.1']
    #allocation4 [shape = 's32[2]{0}', space=sflag, size = 0x8, scoped, tag = 'scoped memory for tpu_custom_call.1']
    #allocation5 [shape = 'u8[16384]{0}', space=vmem, size = 0x4000, scoped, tag = 'output window, operand 0']
    %9 = vsyncpa [#allocation3], 0
    %s10 = scalar_lea.sflag [#allocation3], 1
    %11 = vsyncpa %s10, 0
    %12 = vsyncpa [#allocation4], 0
    %s13 = scalar_lea.sflag [#allocation4], 1
    %14 = vsyncpa %s13, 0
    loop: start=0, step=1, limit=4
    $region2: #{tpu_custom_call.1} parent=1 // loop_pre_header
      _
    $region3: #{tpu_custom_call.1} parent=1 // loop_header
      %s16 = sphi 0, %s20
      %p17 = scmp.ge.s32.totalorder %s16, 4
      %s23 = sphi 0, %s42
      %s24 = sphi 0, %s38
      %s25 = sphi 0, %s34
      %s26 = sphi 0, %s23
      %s27 = sphi 0, %s24
      %s28 = sphi 0, %s25
      %s29 = sphi 0, %s26
      %s30 = sphi 0, %s27
      %s31 = sphi 0, %s28
      %s47 = sphi 0, %s49
      %s50 = sphi 0, %s47
      %s51 = sphi 0, %s50
      %s67 = sphi 0, %s51
      %s73 = sphi 0, %s75
      %s76 = sphi 0, %s73
      %s77 = sphi 0, %s76
      %s93 = sphi 0, %s77
      %s99 = sphi 0, %s101
      %s102 = sphi 0, %s99
      %s103 = sphi 0, %s102
      %s119 = sphi 0, %s103
      %s125 = sphi 0, %s127
      %s128 = sphi 0, %s125
      %s129 = sphi 0, %s128
      %s145 = sphi 0, %s129
      %s155 = sphi 0, %s157
      %s158 = sphi 0, %s155
      %s159 = sphi 0, %s158
      %s175 = sphi 0, %s159
    $region4: #{tpu_custom_call.1} parent=1 // loop_header_branch
      %19 = sbr.rel (%p17) target = $region8
    $region5: #{tpu_custom_call.1} parent=1 // loop_body
      %s21 = ssub.s32 %s16, 1
      %s22 = ssub.s32 %s16, 2
      %s32 = sadd.s32 1, %s25
      %p33 = scmp.ge.s32.totalorder %s32, 1
      %s34 = scalar_select %p33, 0, %s32
      %s35 = sadd.s32 1, %s24
      %s36 = scalar_select %p33, %s35, %s24
      %p37 = scmp.ge.s32.totalorder %s36, 2
      %s38 = scalar_select %p37, 0, %s36
      %s39 = sadd.s32 1, %s23
      %s40 = scalar_select %p37, %s39, %s23
      %p41 = scmp.ge.s32.totalorder %s40, 1
      %s42 = scalar_select %p41, 0, %s40
      %s43 = ssub.s32 %s24, %s38
      %s44 = ssub.s32 %s25, %s34
      %s45 = sor.u32 %s43, %s44
      %p46 = scmp.eq.s32.totalorder %s45, 0
      %s48 = sadd.s32 %s47, 1
      %s49 = scalar_select %p46, %s47, %s48
      %p52 = pneg %p46
      %p53 = scmp.eq.s32.totalorder %s16, 1
      %p54 = por %p52, %p53
      %p55 = scmp.ne.s32.totalorder %s47, %s50
      %p56 = scmp.eq.s32.totalorder %s16, 0
      %p57 = por %p55, %p56
      %p58 = scmp.ne.s32.totalorder %s47, %s50
      %p59 = scmp.eq.s32.totalorder %s21, 1
      %p60 = por %p58, %p59
      %p61 = scmp.ne.s32.totalorder %s50, %s51
      %p62 = scmp.eq.s32.totalorder %s21, 0
      %p63 = por %p61, %p62
      %p64 = scmp.ne.s32.totalorder %s50, %s51
      %p65 = scmp.eq.s32.totalorder %s22, 1
      %p66 = por %p64, %p65
      %p68 = scmp.ne.s32.totalorder %s51, %s67
      %p69 = scmp.eq.s32.totalorder %s22, 0
      %p70 = por %p68, %p69
      %s71 = ssub.s32 %s23, %s42
      %p72 = scmp.eq.s32.totalorder %s71, 0
      %s74 = sadd.s32 %s73, 1
      %s75 = scalar_select %p72, %s73, %s74
      %p78 = pneg %p72
      %p79 = scmp.eq.s32.totalorder %s16, 1
      %p80 = por %p78, %p79
      %p81 = scmp.ne.s32.totalorder %s73, %s76
      %p82 = scmp.eq.s32.totalorder %s16, 0
      %p83 = por %p81, %p82
      %p84 = scmp.ne.s32.totalorder %s73, %s76
      %p85 = scmp.eq.s32.totalorder %s21, 1
      %p86 = por %p84, %p85
      %p87 = scmp.ne.s32.totalorder %s76, %s77
      %p88 = scmp.eq.s32.totalorder %s21, 0
      %p89 = por %p87, %p88
      %p90 = scmp.ne.s32.totalorder %s76, %s77
      %p91 = scmp.eq.s32.totalorder %s22, 1
      %p92 = por %p90, %p91
      %p94 = scmp.ne.s32.totalorder %s77, %s93
      %p95 = scmp.eq.s32.totalorder %s22, 0
      %p96 = por %p94, %p95
      %s97 = ssub.s32 %s23, %s42
      %p98 = scmp.eq.s32.totalorder %s97, 0
      %s100 = sadd.s32 %s99, 1
      %s101 = scalar_select %p98, %s99, %s100
      %p104 = pneg %p98
      %p105 = scmp.eq.s32.totalorder %s16, 1
      %p106 = por %p104, %p105
      %p107 = scmp.ne.s32.totalorder %s99, %s102
      %p108 = scmp.eq.s32.totalorder %s16, 0
      %p109 = por %p107, %p108
      %p110 = scmp.ne.s32.totalorder %s99, %s102
      %p111 = scmp.eq.s32.totalorder %s21, 1
      %p112 = por %p110, %p111
      %p113 = scmp.ne.s32.totalorder %s102, %s103
      %p114 = scmp.eq.s32.totalorder %s21, 0
      %p115 = por %p113, %p114
      %p116 = scmp.ne.s32.totalorder %s102, %s103
      %p117 = scmp.eq.s32.totalorder %s22, 1
      %p118 = por %p116, %p117
      %p120 = scmp.ne.s32.totalorder %s103, %s119
      %p121 = scmp.eq.s32.totalorder %s22, 0
      %p122 = por %p120, %p121
      %s123 = ssub.s32 %s23, %s42
      %p124 = scmp.eq.s32.totalorder %s123, 0
      %s126 = sadd.s32 %s125, 1
      %s127 = scalar_select %p124, %s125, %s126
      %p130 = pneg %p124
      %p131 = scmp.eq.s32.totalorder %s16, 1
      %p132 = por %p130, %p131
      %p133 = scmp.ne.s32.totalorder %s125, %s128
      %p134 = scmp.eq.s32.totalorder %s16, 0
      %p135 = por %p133, %p134
      %p136 = scmp.ne.s32.totalorder %s125, %s128
      %p137 = scmp.eq.s32.totalorder %s21, 1
      %p138 = por %p136, %p137
      %p139 = scmp.ne.s32.totalorder %s128, %s129
      %p140 = scmp.eq.s32.totalorder %s21, 0
      %p141 = por %p139, %p140
      %p142 = scmp.ne.s32.totalorder %s128, %s129
      %p143 = scmp.eq.s32.totalorder %s22, 1
      %p144 = por %p142, %p143
      %p146 = scmp.ne.s32.totalorder %s129, %s145
      %p147 = scmp.eq.s32.totalorder %s22, 0
      %p148 = por %p146, %p147
      %s149 = ssub.s32 %s24, %s38
      %s150 = ssub.s32 %s23, %s42
      %s151 = sor.u32 %s149, %s150
      %s152 = ssub.s32 %s25, %s34
      %s153 = sor.u32 %s151, %s152
      %p154 = scmp.eq.s32.totalorder %s153, 0
      %s156 = sadd.s32 %s155, 1
      %s157 = scalar_select %p154, %s155, %s156
      %p160 = pneg %p154
      %p161 = scmp.eq.s32.totalorder %s16, 1
      %p162 = por %p160, %p161
      %p163 = scmp.ne.s32.totalorder %s155, %s158
      %p164 = scmp.eq.s32.totalorder %s16, 0
      %p165 = por %p163, %p164
      %p166 = scmp.ne.s32.totalorder %s155, %s158
      %p167 = scmp.eq.s32.totalorder %s21, 1
      %p168 = por %p166, %p167
      %p169 = scmp.ne.s32.totalorder %s158, %s159
      %p170 = scmp.eq.s32.totalorder %s21, 0
      %p171 = por %p169, %p170
      %p172 = scmp.ne.s32.totalorder %s158, %s159
      %p173 = scmp.eq.s32.totalorder %s22, 1
      %p174 = por %p172, %p173
      %p176 = scmp.ne.s32.totalorder %s159, %s175
      %p177 = scmp.eq.s32.totalorder %s22, 0
      %p178 = por %p176, %p177
      %p179 = scmp.le.s32.totalorder 1, %s16
      %p180 = scmp.lt.s32.totalorder %s16, 3
      %p181 = pnand %p179, %p180
      %p182 = pneg %p181
      // Predicated region
      $region9: #{tpu_custom_call.1} parent=5 // pred_check
        _
      $region10: #{tpu_custom_call.1} parent=5 // pred_check_branch
        %184 = sbr.rel (%p181) target = $region12
      $region11: #{tpu_custom_call.1} parent=5 // pred_region
        %s185 = ssub.s32 %s16, 1
        // Predicated region
        $region13: #{tpu_custom_call.1} parent=11 // pred_check
          %p186 = pneg %p89
        $region14: #{tpu_custom_call.1} parent=11 // pred_check_branch
          %188 = sbr.rel (%p186) target = $region16
        $region15: #{tpu_custom_call.1} parent=11 // pred_region
          %p189 = scmp.lt.s32.totalorder %s26, 0
          %s190 = scalar_select %p189, %s26, 0
          %s191 = smul.addr %s190, 8
          %s192 = scalar_lea.vmem %s1, %s191
        $region16: #{tpu_custom_call.1} parent=11 // pred_fallthru
          _
        // Predicated region
        $region17: #{tpu_custom_call.1} parent=11 // pred_check
          %p193 = pneg %p115
        $region18: #{tpu_custom_call.1} parent=11 // pred_check_branch
          %195 = sbr.rel (%p193) target = $region20
        $region19: #{tpu_custom_call.1} parent=11 // pred_region
          %p196 = scmp.lt.s32.totalorder %s26, 0
          %s197 = scalar_select %p196, %s26, 0
          %s198 = smul.addr %s197, 8
          %s199 = scalar_lea.vmem %s2, %s198
        $region20: #{tpu_custom_call.1} parent=11 // pred_fallthru
          _
        // Predicated region
        $region21: #{tpu_custom_call.1} parent=11 // pred_check
          %p200 = pneg %p141
        $region22: #{tpu_custom_call.1} parent=11 // pred_check_branch
          %202 = sbr.rel (%p200) target = $region24
        $region23: #{tpu_custom_call.1} parent=11 // pred_region
          %p203 = scmp.lt.s32.totalorder %s26, 0
          %s204 = scalar_select %p203, %s26, 0
          %s205 = smul.addr %s204, 8
          %s206 = scalar_lea.vmem %s3, %s205
        $region24: #{tpu_custom_call.1} parent=11 // pred_fallthru
          _
      $region12: #{tpu_custom_call.1} parent=5 // pred_fallthru
        _
      %p207 = scmp.lt.s32.totalorder %s16, 2
      // Predicated region
      $region25: #{tpu_custom_call.1} parent=5 // pred_check
        %p208 = pneg %p207
      $region26: #{tpu_custom_call.1} parent=5 // pred_check_branch
        %210 = sbr.rel (%p208) target = $region28
      $region27: #{tpu_custom_call.1} parent=5 // pred_region
        // Predicated region
        $region29: #{tpu_custom_call.1} parent=27 // pred_check
          %p211 = pneg %p57
        $region30: #{tpu_custom_call.1} parent=27 // pred_check_branch
          %213 = sbr.rel (%p211) target = $region32
        $region31: #{tpu_custom_call.1} parent=27 // pred_region
          %s214 = sand.u32 %s47, 1
          %s215 = scalar_lea.sflag [#allocation3], %s214
          %s216 = sand.u32 %s47, 1
          %s217 = smul.addr %s216, 80
          %s218 = scalar_lea.vmem [#allocation2], %s217
          %s219 = smul.u32 2, %s25
          %s221 = ssub.s32 1280, 1280
          %222 = vsyncadd %s215, %s221
          %s223 = smul.addr %s24, 10
          %s224 = sadd.s32 %s219, %s223
          %s225 = smul.addr %s224, 128
          %s226 = scalar_lea.hbm %s0, %s225
          %s227 = sshll.u32 %s218, 4
          %s228 = int_to_ptr.vmem [resolvable:$true] %s227
          %233 = dma.hbm_to_vmem [thread:$0]  %s226, 1280, %s228, %s215, 256, 256, 16
        $region32: #{tpu_custom_call.1} parent=27 // pred_fallthru
          _
      $region28: #{tpu_custom_call.1} parent=5 // pred_fallthru
        _
      %p234 = scmp.le.s32.totalorder 1, %s16
      %p235 = scmp.lt.s32.totalorder %s16, 3
      %p236 = pnand %p234, %p235
      %p237 = pneg %p236
      // Predicated region
      $region33: #{tpu_custom_call.1} parent=5 // pred_check
        _
      $region34: #{tpu_custom_call.1} parent=5 // pred_check_branch
        %239 = sbr.rel (%p236) target = $region36
      $region35: #{tpu_custom_call.1} parent=5 // pred_region
        %s240 = ssub.s32 %s16, 1
        %s241 = sand.u32 %s50, 1
        %s242 = scalar_lea.sflag [#allocation3], %s241
        %s243 = sand.u32 %s50, 1
        %s244 = smul.addr %s243, 80
        %s245 = scalar_lea.vmem [#allocation2], %s244
        // Predicated region
        $region37: #{tpu_custom_call.1} parent=35 // pred_check
          %p246 = pneg %p63
        $region38: #{tpu_custom_call.1} parent=35 // pred_check_branch
          %248 = sbr.rel (%p246) target = $region40
        $region39: #{tpu_custom_call.1} parent=35 // pred_region
          %249 = dma.done %s242, 1280
        $region40: #{tpu_custom_call.1} parent=35 // pred_fallthru
          _
        %s250 = sand.u32 %s50, 1
        %s251 = scalar_lea.sflag [#allocation3], %s250
        %s252 = sand.u32 %s50, 1
        %s253 = smul.addr %s252, 80
        %s254 = scalar_lea.vmem [#allocation2], %s253
        %p255 = pneg %p63
        %p256 = pneg %p60
        %p257 = scmp.lt.s32.totalorder %s26, 0
        %s258 = scalar_select %p257, %s26, 0
        %s259 = smul.addr %s258, 8
        %s260 = scalar_lea.vmem %s1, %s259
        %p261 = pneg %p89
        %p262 = pneg %p86
        %p263 = scmp.lt.s32.totalorder %s26, 0
        %s264 = scalar_select %p263, %s26, 0
        %s265 = smul.addr %s264, 8
        %s266 = scalar_lea.vmem %s2, %s265
        %p267 = pneg %p115
        %p268 = pneg %p112
        %p269 = scmp.lt.s32.totalorder %s26, 0
        %s270 = scalar_select %p269, %s26, 0
        %s271 = smul.addr %s270, 8
        %s272 = scalar_lea.vmem %s3, %s271
        %p273 = pneg %p141
        %p274 = pneg %p138
        %p275 = pneg %p171
        %p276 = pneg %p168
        %s277 = sand.u32 %s158, 1
        %s278 = scalar_lea.sflag [#allocation4], %s277
        %s279 = sand.u32 %s158, 1
        %s280 = smul.addr %s279, 16
        %s281 = scalar_lea.vmem [#allocation5], %s280
        %s282 = smul.u32 2, %s28
        %p283 = scmp.lt.s32.totalorder %s26, 0
        %s284 = scalar_select %p283, %s26, 0
        %s285 = smul.addr %s284, 8
        %s286 = scalar_lea.vmem %s1, %s285
        %p287 = scmp.lt.s32.totalorder %s26, 0
        %s288 = scalar_select %p287, %s26, 0
        %s289 = smul.addr %s288, 8
        %s290 = scalar_lea.vmem %s2, %s289
        %p291 = scmp.lt.s32.totalorder %s26, 0
        %s292 = scalar_select %p291, %s26, 0
        %s293 = smul.addr %s292, 8
        %s294 = scalar_lea.vmem %s3, %s293
        %s295 = smul.u32 2, %s28
        %v296 = vld [vmem:[%s286] sm:$0xff]
        %v297 = vld [vmem:[%s245] sm:$0xff]
        %v298 = vld [vmem:[%s245 + $0x8] sm:$0xff]
        %v299 = vld [vmem:[%s245 + $0x10] sm:$0xff]
        %v300 = vld [vmem:[%s245 + $0x18] sm:$0xff]
        %v301 = vld [vmem:[%s245 + $0x20] sm:$0xff]
        %v302 = vld [vmem:[%s245 + $0x28] sm:$0xff]
        %v303 = vld [vmem:[%s245 + $0x30] sm:$0xff]
        %v304 = vld [vmem:[%s245 + $0x38] sm:$0xff]
        %v305 = vld [vmem:[%s245 + $0x40] sm:$0xff]
        %v306 = vld [vmem:[%s245 + $0x48] sm:$0xff]
        %vm307 = vcmask 326656
        %v309 = vsel %vm307, %v296, 0
        %311 = vmatprep.subr.mxu0 %v298
        %312 = vmatpush1.msra.mxu0 %v297
        %313 = vmatprep.subr.mxu0 %v300
        %314 = vmatpush1.msra.mxu0 %v299
        %315 = vmatprep.subr.mxu0 %v302
        %316 = vmatpush1.msra.mxu0 %v301
        %317 = vmatprep.subr.mxu0 %v304
        %318 = vmatpush1.msra.mxu0 %v303
        %319 = vmatprep.subr.mxu0 %v306
        %320 = vmatpush1.msra.mxu0 %v305
        %321 = vmatprep.subr.mxu0 0.0
        %322 = vmatpush1.msra.mxu0 0.0
        %323 = vmatprep.subr.mxu0 0.0
        %324 = vmatpush1.msra.mxu0 0.0
        %325 = vmatprep.subr.mxu0 0.0
        %326 = vmatpush1.msra.mxu0 0.0
        %327 = vmatprep.subr.mxu0 0.0
        %328 = vmatpush1.msra.mxu0 0.0
        %329 = vmatprep.subr.mxu0 0.0
        %330 = vmatpush1.msra.mxu0 0.0
        %331 = vmatprep.subr.mxu0 0.0
        %332 = vmatpush1.msra.mxu0 0.0
        %333 = vmatprep.subr.mxu0 0.0
        %334 = vmatpush1.msra.mxu0 0.0
        %335 = vmatprep.subr.mxu0 0.0
        %336 = vmatpush1.msra.mxu0 0.0
        %337 = vmatprep.subr.mxu0 0.0
        %338 = vmatpush1.msra.mxu0 0.0
        %339 = vmatprep.subr.mxu0 0.0
        %340 = vmatpush1.msra.mxu0 0.0
        %341 = vmatprep.subr.mxu0 0.0
        %342 = vmatpush1.msra.mxu0 0.0
        %343 = vmatprep.subr.mxu0 0.0
        %344 = vmatpush1.msra.mxu0 0.0
        %345 = vmatprep.subr.mxu0 0.0
        %346 = vmatpush1.msra.mxu0 0.0
        %347 = vmatprep.subr.mxu0 0.0
        %348 = vmatpush1.msra.mxu0 0.0
        %349 = vmatprep.subr.mxu0 0.0
        %350 = vmatpush1.msra.mxu0 0.0
        %351 = vmatprep.subr.mxu0 0.0
        %352 = vmatpush1.msra.mxu0 0.0
        %353 = vmatprep.subr.mxu0 0.0
        %354 = vmatpush1.msra.mxu0 0.0
        %355 = vmatprep.subr.mxu0 0.0
        %356 = vmatpush1.msra.mxu0 0.0
        %357 = vmatprep.subr.mxu0 0.0
        %358 = vmatpush1.msra.mxu0 0.0
        %359 = vmatprep.subr.mxu0 0.0
        %360 = vmatpush1.msra.mxu0 0.0
        %361 = vmatprep.subr.mxu0 0.0
        %362 = vmatpush1.msra.mxu0 0.0
        %363 = vmatprep.subr.mxu0 0.0
        %364 = vmatpush1.msra.mxu0 0.0
        %365 = vmatprep.subr.mxu0 0.0
        %366 = vmatpush1.msra.mxu0 0.0
        %367 = vmatprep.subr.mxu0 0.0
        %368 = vmatpush1.msra.mxu0 0.0
        %369 = vmatprep.subr.mxu0 0.0
        %370 = vmatpush1.msra.mxu0 0.0
        %371 = vmatprep.subr.mxu0 0.0
        %372 = vmatpush1.msra.mxu0 0.0
        %373 = vmatprep.subr.mxu0 0.0
        %374 = vmatpush1.msra.mxu0 0.0
        %375 = vmatprep.mubr.f32.mxu0 0.0
        %376 = vmatmul.mubr.f32.gmra.mrb[0].mxu0 %v309
        %v377 = vpop.f32.mrb[0].mxu0
        %v378 = vadd.f32 0.0, %v377
        %v379 = vpop.f32.mrb[0].mxu0
        %v380 = vadd.f32 0.0, %v379
        %381 = vdwg.mxu0
        %v382 = vld [vmem:[%s290] sm:$0xff]
        %384 = vset.pattern.permute.xlu0 0
        %385 = vperm.xlu0 %384, %v382
        %v386 = vpop.permute.xlu0 %385
        %v388 = vmul.f32 %v378, %v386
        %v389 = vmul.f32 %v380, %v386
        %v390 = vld [vmem:[%s294] sm:$0xff]
        %392 = vset.pattern.permute.xlu0 0
        %393 = vperm.xlu0 %392, %v390
        %v394 = vpop.permute.xlu0 %393
        %v396 = vadd.f32 %v388, %v394
        %v397 = vadd.f32 %v389, %v394
        %398 = vst [vmem:[%s281] sm:$0xff] %v396
        %399 = vst [vmem:[%s281 + $0x8] sm:$0xff] %v397
        %s400 = sand.u32 %s158, 1
        %s401 = scalar_lea.sflag [#allocation4], %s400
        %s402 = sand.u32 %s158, 1
        %s403 = smul.addr %s402, 16
        %s404 = scalar_lea.vmem [#allocation5], %s403
        // Predicated region
        $region41: #{tpu_custom_call.1} parent=35 // pred_check
          %p405 = pneg %p168
        $region42: #{tpu_custom_call.1} parent=35 // pred_check_branch
          %407 = sbr.rel (%p405) target = $region44
        $region43: #{tpu_custom_call.1} parent=35 // pred_region
          %s408 = smul.u32 2, %s28
          %s410 = ssub.s32 256, 256
          %411 = vsyncadd %s401, %s410
          %s412 = smul.addr %s26, 2
          %s413 = sadd.s32 %s408, %s412
          %s414 = smul.addr %s27, 2
          %s415 = sadd.s32 %s413, %s414
          %s416 = smul.addr %s415, 128
          %s417 = scalar_lea.hbm %s4, %s416
          %s419 = sshll.u32 %s404, 4
          %s420 = int_to_ptr.vmem [resolvable:$true] %s419
          %422 = dma.vmem_to_hbm [thread:$0]  %s420, 256, %s417, %s401
        $region44: #{tpu_custom_call.1} parent=35 // pred_fallthru
          _
      $region36: #{tpu_custom_call.1} parent=5 // pred_fallthru
        _
      %p423 = scmp.le.s32.totalorder 2, %s16
      // Predicated region
      $region45: #{tpu_custom_call.1} parent=5 // pred_check
        %p424 = pneg %p423
      $region46: #{tpu_custom_call.1} parent=5 // pred_check_branch
        %426 = sbr.rel (%p424) target = $region48
      $region47: #{tpu_custom_call.1} parent=5 // pred_region
        %s427 = ssub.s32 %s16, 2
        // Predicated region
        $region49: #{tpu_custom_call.1} parent=47 // pred_check
          %p428 = pneg %p174
        $region50: #{tpu_custom_call.1} parent=47 // pred_check_branch
          %430 = sbr.rel (%p428) target = $region52
        $region51: #{tpu_custom_call.1} parent=47 // pred_region
          %s431 = sand.u32 %s159, 1
          %s432 = scalar_lea.sflag [#allocation4], %s431
          %s433 = sand.u32 %s159, 1
          %s434 = smul.addr %s433, 16
          %s435 = scalar_lea.vmem [#allocation5], %s434
          %436 = dma.done %s432, 256
        $region52: #{tpu_custom_call.1} parent=47 // pred_fallthru
          _
      $region48: #{tpu_custom_call.1} parent=5 // pred_fallthru
        _
    $region6: #{tpu_custom_call.1} parent=1 // loop_footer
      %s20 = sadd.s32 1, %s16
    $region7: #{tpu_custom_call.1} parent=1 // loop_footer_branch
      %15 = sbr.rel target = $region3
    $region8: #{tpu_custom_call.1} parent=1 // loop_exit
      _
    %437 = vsyncpa [#allocation3], 1
    %s438 = scalar_lea.sflag [#allocation3], 1
    %439 = vsyncpa %s438, 1
    %440 = vsyncpa [#allocation4], 1
    %s441 = scalar_lea.sflag [#allocation4], 1
    %442 = vsyncpa %s441, 1

</llo_original>
